<compile_context>
chip_gen: v5e
topology: v5e:2x2
jax: 0.10.0
libtpu: 0.0.40
codegen_flags: <defaults>
</compile_context>

<pallas_src>
import functools
import math

import jax
import jax.numpy as jnp
from jax import lax
from jax.experimental import pallas as pl
from jax.experimental.pallas import tpu as pltpu

CONV_PAD = 8    # sublane-aligned history kept for the depthwise causal conv (>= d_conv - 1)
SCAN_BLK = 8    # scan steps per readout block (aligned 8-row stores, 8*d_state MXU K dim)


# ---------------------------------------------------------------------------------------------
# MambaBlock kernel: LayerNorm + S6 selective-state-space mixer + residual, chunked over L.
# ---------------------------------------------------------------------------------------------
def _mamba_block_kernel(
    x_ref, ln_g_ref, ln_b_ref, w_in_ref, w_conv_ref, b_conv_ref,
    w_x_ref, w_dt_pad_ref, b_dt_ref, a_log_t_ref, d_ref, w_out_ref,
    out_ref,
    xc_ext_s, conv_carry_s, h_carry_s, da_s, du_s, b_s, c_s, y_s, hstack_s,
    *, reverse,
):
    f32 = jnp.float32
    bf16 = jnp.bfloat16
    Lc = x_ref.shape[1]
    d_state, d_inner = a_log_t_ref.shape
    dt_rank = w_x_ref.shape[1] - 2 * d_state
    K = w_conv_ref.shape[0]
    chunk_idx = pl.program_id(1)

    # Correctness note: the recurrent carries (conv_carry_s, h_carry_s) rely on the chunk axis
    # being the innermost, in-order ("arbitrary") grid axis; they reset at chunk_idx == 0.
    @pl.when(chunk_idx == 0)
    def _():
        conv_carry_s[...] = jnp.zeros_like(conv_carry_s)
        h_carry_s[...] = jnp.zeros_like(h_carry_s)

    x = x_ref[0]                                                     # (Lc, d_model), f32

    # ---- LayerNorm over the feature axis ----
    mu = jnp.mean(x, axis=-1, keepdims=True)
    var = jnp.mean(jnp.square(x - mu), axis=-1, keepdims=True)
    xn = (x - mu) * lax.rsqrt(var + 1e-5) * ln_g_ref[...] + ln_b_ref[...]

    # ---- in_proj (bf16 weights pre-cast on host; MXU, f32 accumulate) ----
    xr = jnp.dot(xn.astype(bf16), w_in_ref[...], preferred_element_type=f32)
    xc = xr[:, :d_inner]                                             # conv branch
    res = xr[:, d_inner:]                                            # gating branch

    # ---- depthwise conv1d (causal fwd / anti-causal rev) with cross-chunk history ----
    if not reverse:
        xc_ext_s[0:CONV_PAD, :] = conv_carry_s[...]                  # [history | chunk]
        xc_ext_s[CONV_PAD:CONV_PAD + Lc, :] = xc
    else:
        xc_ext_s[0:Lc, :] = xc                                       # [chunk | future history]
        xc_ext_s[Lc:Lc + CONV_PAD, :] = conv_carry_s[...]
    xe = xc_ext_s[...]                                               # (Lc + CONV_PAD, d_inner)
    conv = b_conv_ref[...]                                           # (1, d_inner), broadcasts
    for k in range(K):                                               # static unroll over taps
        s = K - 1 - k                                                # tap distance from output row
        off = (CONV_PAD - s) if not reverse else s
        conv = conv + xe[off:off + Lc, :] * w_conv_ref[k:k + 1, :]
    if not reverse:
        conv_carry_s[...] = xc[Lc - CONV_PAD:Lc, :]                  # last rows -> next chunk
    else:
        conv_carry_s[...] = xc[0:CONV_PAD, :]                        # first rows -> previous chunk
    u = conv * jax.nn.sigmoid(conv)                                  # SiLU, (Lc, d_inner)

    # ---- x_proj -> (delta_raw | B | C); dt_proj via zero-padded f32 weight ----
    xp = jnp.dot(u.astype(bf16), w_x_ref[...], preferred_element_type=f32)
    dlt = jax.nn.softplus(
        jnp.dot(xp, w_dt_pad_ref[...], preferred_element_type=f32) + b_dt_ref[...])
    b_s[...] = xp[:, dt_rank:dt_rank + d_state]                      # (Lc, d_state)
    c_s[...] = xp[:, dt_rank + d_state:dt_rank + 2 * d_state]        # (Lc, d_state)
    du_s[...] = dlt * u                                              # (Lc, d_inner)

    # ---- discretized A, state-major (Lc, d_state, d_inner) with d_inner on lanes ----
    a_neg = -jnp.exp(a_log_t_ref[...])                               # (d_state, d_inner)
    da_s[...] = jnp.exp(dlt[:, None, :] * a_neg[None, :, :])

    # ---- selective scan: 8-step blocks, batched block-diagonal readout ----
    n_blk = Lc // SCAN_BLK
    col = lax.broadcasted_iota(jnp.int32, (SCAN_BLK, SCAN_BLK * d_state), 1)
    row = lax.broadcasted_iota(jnp.int32, (SCAN_BLK, SCAN_BLK * d_state), 0)
    blkdiag_mask = (col // d_state) == row                           # hoisted out of the loop

    def body(i, h):
        blk = (n_blk - 1 - i) if reverse else i
        base = pl.multiple_of(blk * SCAN_BLK, SCAN_BLK)
        da_blk = da_s[pl.ds(base, SCAN_BLK), :, :]                   # (8, d_state, d_inner)
        du_blk = du_s[pl.ds(base, SCAN_BLK), :]                      # (8, d_inner)
        b_blk = b_s[pl.ds(base, SCAN_BLK), :]                        # (8, d_state)
        # B (x) (delta*u) outer product formed per block -> no (Lc, d_state, d_inner) dbu buffer.
        db_blk = b_blk[:, :, None] * du_blk[:, None, :]              # (8, d_state, d_inner)
        steps = range(SCAN_BLK - 1, -1, -1) if reverse else range(SCAN_BLK)
        for j in steps:                                              # serial VPU FMA chain
            h = da_blk[j] * h + db_blk[j]
            hstack_s[j * d_state:(j + 1) * d_state, :] = h           # aligned 16-row writes
        # batched readout: y[base+j] = C[base+j] . h_j via block-diagonal C matmul
        c_blk = c_s[pl.ds(base, SCAN_BLK), :]                        # (8, d_state)
        c_rep = jnp.concatenate([c_blk] * SCAN_BLK, axis=1)          # (8, 8*d_state)
        c_big = jnp.where(blkdiag_mask, c_rep, 0.0)
        y_s[pl.ds(base, SCAN_BLK), :] = jnp.dot(c_big, hstack_s[...],
                                                preferred_element_type=f32)
        return h

    h_carry_s[...] = lax.fori_loop(0, n_blk, body, h_carry_s[...])

    # ---- skip term, gate with SiLU(res), out_proj, residual ----
    y = y_s[...] + u * d_ref[...]
    y = y * (res * jax.nn.sigmoid(res))
    out = jnp.dot(y.astype(bf16), w_out_ref[...], preferred_element_type=f32)
    out_ref[0] = out + x


def _pick_chunk(L, chunk):
    """Largest multiple-of-8 divisor of L that is <= chunk (falls back to L)."""
    assert L % SCAN_BLK == 0, "sequence length must be a multiple of 8"
    if L <= chunk:
        return L
    best = L
    for c in range(SCAN_BLK, chunk + 1, SCAN_BLK):
        if L % c == 0:
            best = c
    return best


def mamba_block(x, p, *, chunk=128, reverse=False):
    """One MambaBlock (LayerNorm + S6 + residual) over x of shape (B, L, d_model).

    With reverse=True the block computes flip(block(flip(x))) without materializing any flipped
    copy: chunks are visited back-to-front and the conv/scan run anti-causally in-kernel.
    """
    B, L, d_model = x.shape
    d_state, d_inner = p["A_log_t"].shape
    K = p["w_conv_t"].shape[0]
    assert K - 1 <= CONV_PAD

    Lc = _pick_chunk(L, chunk)
    assert L % Lc == 0 and Lc % SCAN_BLK == 0 and Lc >= CONV_PAD, (L, Lc)
    nchunks = L // Lc

    weights = [p["ln_g"], p["ln_b"], p["w_in_t"], p["w_conv_t"], p["b_conv"],
               p["w_x_t"], p["w_dt_pad"], p["b_dt"], p["A_log_t"], p["D"], p["w_out_t"]]

    def _wspec(a):
        return pl.BlockSpec(a.shape, lambda b, c, _nd=a.ndim: (0,) * _nd)

    if reverse:
        seq_map = lambda b, c: (b, nchunks - 1 - c, 0)
    else:
        seq_map = lambda b, c: (b, c, 0)

    in_specs = [pl.BlockSpec((1, Lc, d_model), seq_map)]
    in_specs += [_wspec(a) for a in weights]
    out_specs = pl.BlockSpec((1, Lc, d_model), seq_map)

    scratch_shapes = [
        pltpu.VMEM((Lc + CONV_PAD, d_inner), jnp.float32),        # conv staging (chunk + history)
        pltpu.VMEM((CONV_PAD, d_inner), jnp.float32),             # conv history carry
        pltpu.VMEM((d_state, d_inner), jnp.float32),              # scan state carry h
        pltpu.VMEM((Lc, d_state, d_inner), jnp.float32),          # exp(delta * A) (only 3D buffer)
        pltpu.VMEM((Lc, d_inner), jnp.float32),                   # delta * u
        pltpu.VMEM((Lc, d_state), jnp.float32),                   # B
        pltpu.VMEM((Lc, d_state), jnp.float32),                   # C
        pltpu.VMEM((Lc, d_inner), jnp.float32),                   # per-step readout y
        pltpu.VMEM((SCAN_BLK * d_state, d_inner), jnp.float32),   # 8-step h stack for readout
    ]

    # Explicit VMEM budget (kept < 64 MiB so the same tiling works on v7x).
    scratch_elems = ((Lc + CONV_PAD) * d_inner + CONV_PAD * d_inner + d_state * d_inner
                     + Lc * d_state * d_inner + 2 * Lc * d_inner + 2 * Lc * d_state
                     + SCAN_BLK * d_state * d_inner)
    scratch_bytes = 4 * scratch_elems
    io_bytes = 2 * 2 * Lc * d_model * 4                           # double-buffered in + out blocks
    weight_bytes = sum(int(w.size) * w.dtype.itemsize for w in weights)
    total_bytes = scratch_bytes + io_bytes + 2 * weight_bytes
    assert total_bytes < 48 * 1024 * 1024, (
        f"mamba_block VMEM footprint {total_bytes} too large; reduce `chunk` (Lc={Lc})")
    vmem_limit = int(min(64 * 1024 * 1024, max(32 * 1024 * 1024, 2 * total_bytes)))

    kernel = functools.partial(_mamba_block_kernel, reverse=reverse)
    return pl.pallas_call(
        kernel,
        out_shape=jax.ShapeDtypeStruct((B, L, d_model), jnp.float32),
        grid=(B, nchunks),
        in_specs=in_specs,
        out_specs=out_specs,
        scratch_shapes=scratch_shapes,
        compiler_params=pltpu.CompilerParams(
            dimension_semantics=("parallel", "arbitrary"),
            vmem_limit_bytes=vmem_limit),
    )(x, *weights)


# ---------------------------------------------------------------------------------------------
# Fused 1x1 conv + (folded) BatchNorm [+ ReLU] [+ residual] kernel over a (B, L, C) sequence.
# ---------------------------------------------------------------------------------------------
def _pointwise_kernel(x_ref, w_ref, b_ref, *rest, relu, residual):
    if residual:
        r_ref, out_ref = rest
    else:
        (out_ref,) = rest
    y = jnp.dot(x_ref[0].astype(jnp.bfloat16), w_ref[...],
                preferred_element_type=jnp.float32) + b_ref[...]
    if relu:
        y = jnp.maximum(y, 0.0)
    if residual:
        y = y + r_ref[0]
    out_ref[0] = y


def pointwise_proj(x, w, b, *, residual=None, relu=False, chunk=256):
    B, L, cin = x.shape
    cout = w.shape[1]
    Lc = chunk if (chunk <= L and L % chunk == 0) else L

    args = [x, w, b]
    in_specs = [pl.BlockSpec((1, Lc, cin), lambda bi, ci: (bi, ci, 0)),
                pl.BlockSpec(w.shape, lambda bi, ci: (0, 0)),
                pl.BlockSpec(b.shape, lambda bi, ci: (0, 0))]
    if residual is not None:
        args.append(residual)
        in_specs.append(pl.BlockSpec((1, Lc, cout), lambda bi, ci: (bi, ci, 0)))

    kernel = functools.partial(_pointwise_kernel, relu=relu, residual=residual is not None)
    return pl.pallas_call(
        kernel,
        out_shape=jax.ShapeDtypeStruct((B, L, cout), jnp.float32),
        grid=(B, L // Lc),
        in_specs=in_specs,
        out_specs=pl.BlockSpec((1, Lc, cout), lambda bi, ci: (bi, ci, 0)),
        compiler_params=pltpu.CompilerParams(
            dimension_semantics=("parallel", "parallel")),
    )(*args)


# Bidirectional output projection: concat([x_fwd, x_bwd]) @ W fused as two partial matmuls
# (no materialized (B, L, 2C) concat), plus folded BN bias and the feat residual.
def _out_bidir_kernel(xf_ref, xb_ref, wf_ref, wb_ref, b_ref, r_ref, out_ref):
    bf16 = jnp.bfloat16
    f32 = jnp.float32
    y = jnp.dot(xf_ref[0].astype(bf16), wf_ref[...], preferred_element_type=f32)
    y = y + jnp.dot(xb_ref[0].astype(bf16), wb_ref[...], preferred_element_type=f32)
    out_ref[0] = y + b_ref[...] + r_ref[0]


def out_proj_bidir(x_fwd, x_bwd, feat, wf, wb, b, *, chunk=256):
    B, L, C = feat.shape
    cout = wf.shape[1]
    Lc = chunk if (chunk <= L and L % chunk == 0) else L
    seq = lambda bi, ci: (bi, ci, 0)
    in_specs = [pl.BlockSpec((1, Lc, x_fwd.shape[2]), seq),
                pl.BlockSpec((1, Lc, x_bwd.shape[2]), seq),
                pl.BlockSpec(wf.shape, lambda bi, ci: (0, 0)),
                pl.BlockSpec(wb.shape, lambda bi, ci: (0, 0)),
                pl.BlockSpec(b.shape, lambda bi, ci: (0, 0)),
                pl.BlockSpec((1, Lc, C), seq)]
    return pl.pallas_call(
        _out_bidir_kernel,
        out_shape=jax.ShapeDtypeStruct((B, L, cout), jnp.float32),
        grid=(B, L // Lc),
        in_specs=in_specs,
        out_specs=pl.BlockSpec((1, Lc, cout), seq),
        compiler_params=pltpu.CompilerParams(
            dimension_semantics=("parallel", "parallel")),
    )(x_fwd, x_bwd, wf, wb, b, feat)


# ---------------------------------------------------------------------------------------------
# SpatialMamba forward built from the Pallas kernels (only the b c h w <-> b (h w) c reshapes
# remain outside the kernels; flips and the bidirectional concat are fused away).
# ---------------------------------------------------------------------------------------------
def spatial_mamba(x, prep, *, chunk=128):
    B, C, H, W = x.shape
    L = H * W
    x_seq = jnp.transpose(x, (0, 2, 3, 1)).reshape(B, L, C)          # b c h w -> b (h w) c

    feat = pointwise_proj(x_seq, prep["feat_w"], prep["feat_b"], relu=True)

    x_fwd = feat
    for lp in prep["layers_fwd"]:
        x_fwd = mamba_block(x_fwd, lp, chunk=chunk)

    if prep["bidirectional"]:
        x_bwd = feat
        for lp in prep["layers_bwd"]:
            x_bwd = mamba_block(x_bwd, lp, chunk=chunk, reverse=True)  # flip-free backward pass
        out = out_proj_bidir(x_fwd, x_bwd, feat,
                             prep["out_w_f"], prep["out_w_b"], prep["out_b"])
    else:
        out = pointwise_proj(x_fwd, prep["out_w"], prep["out_b"],
                             residual=feat, relu=False)
    return jnp.transpose(out.reshape(B, H, W, C), (0, 3, 1, 2))      # b (h w) c -> b c h w


# ---------------------------------------------------------------------------------------------
# Parameter init (PyTorch-like shapes) and kernel-ready preprocessing (BN folding, bf16 weights).
# ---------------------------------------------------------------------------------------------
def _unif(key, shape, scale):
    return jax.random.uniform(key, shape, jnp.float32, -scale, scale)


def init_mamba_layer(key, d_model, d_state=16, d_conv=4, expand=2, dt_rank="auto"):
    d_inner = int(expand * d_model)
    if dt_rank == "auto":
        dt_rank = max(1, math.ceil(d_model / 16))
    ks = jax.random.split(key, 7)
    return {
        "ln_g": jnp.ones((d_model,), jnp.float32),
        "ln_b": jnp.zeros((d_model,), jnp.float32),
        "w_in_t": _unif(ks[0], (d_model, 2 * d_inner), 1.0 / math.sqrt(d_model)),
        "w_conv_t": _unif(ks[1], (d_conv, d_inner), 1.0 / math.sqrt(d_conv)),
        "b_conv": _unif(ks[2], (d_inner,), 1.0 / math.sqrt(d_conv)),
        "w_x_t": _unif(ks[3], (d_inner, dt_rank + 2 * d_state), 1.0 / math.sqrt(d_inner)),
        "w_dt_t": _unif(ks[4], (dt_rank, d_inner), dt_rank ** (-0.5) * 2.0),
        "b_dt": _unif(ks[5], (d_inner,), 1.0 / math.sqrt(dt_rank)),
        "A_log": jnp.log(jnp.broadcast_to(
            jnp.arange(1, d_state + 1, dtype=jnp.float32), (d_inner, d_state))),
        "D": jnp.ones((d_inner,), jnp.float32),
        "w_out_t": _unif(ks[6], (d_inner, d_model), 1.0 / math.sqrt(d_inner)),
    }


def init_conv_bn(key, cin, cout):
    ks = jax.random.split(key, 6)
    return {
        "w_t": _unif(ks[0], (cin, cout), 1.0 / math.sqrt(cin)),
        "b": _unif(ks[1], (cout,), 1.0 / math.sqrt(cin)),
        "bn_g": 1.0 + 0.1 * jax.random.normal(ks[2], (cout,), jnp.float32),
        "bn_b": 0.1 * jax.random.normal(ks[3], (cout,), jnp.float32),
        "bn_mean": 0.1 * jax.random.normal(ks[4], (cout,), jnp.float32),
        "bn_var": 1.0 + 0.1 * jax.random.uniform(ks[5], (cout,), jnp.float32),
    }


def init_spatial_mamba(key, in_channels, d_state=16, d_conv=4, expand=2,
                       n_layers=2, bidirectional=True):
    keys = jax.random.split(key, 2 + 2 * n_layers)
    return {
        "bidirectional": bidirectional,
        "feat_proj": init_conv_bn(keys[0], in_channels, in_channels),
        "out_proj": init_conv_bn(keys[1], in_channels * (2 if bidirectional else 1), in_channels),
        "layers_fwd": [init_mamba_layer(keys[2 + i], in_channels, d_state, d_conv, expand)
                       for i in range(n_layers)],
        "layers_bwd": ([init_mamba_layer(keys[2 + n_layers + i], in_channels, d_state, d_conv,
                                         expand) for i in range(n_layers)]
                       if bidirectional else []),
    }


def _fold_bn(p, eps=1e-5):
    scale = p["bn_g"] / jnp.sqrt(p["bn_var"] + eps)
    w = p["w_t"] * scale[None, :]
    b = (p["b"] - p["bn_mean"]) * scale + p["bn_b"]
    return w, b.reshape(1, -1)


def prepare_mamba_layer(p):
    dt_rank = p["w_dt_t"].shape[0]
    d_inner, d_state = p["A_log"].shape
    bf16 = jnp.bfloat16
    # dt_proj is applied to the full x_proj output via a zero-padded f32 weight: keeps the x_proj
    # matmul un-fused (no dense (d_inner, d_inner) weight) while avoiding a K=dt_rank matmul.
    w_dt_pad = jnp.concatenate(
        [p["w_dt_t"], jnp.zeros((2 * d_state, d_inner), jnp.float32)], axis=0)
    return {
        "ln_g": p["ln_g"].reshape(1, -1),
        "ln_b": p["ln_b"].reshape(1, -1),
        "w_in_t": p["w_in_t"].astype(bf16),
        "w_conv_t": p["w_conv_t"],
        "b_conv": p["b_conv"].reshape(1, -1),
        "w_x_t": p["w_x_t"].astype(bf16),
        "w_dt_pad": w_dt_pad,
        "b_dt": p["b_dt"].reshape(1, -1),
        "A_log_t": p["A_log"].T,                                    # state-major layout
        "D": p["D"].reshape(1, -1),
        "w_out_t": p["w_out_t"].astype(bf16),
    }


def prepare_spatial_mamba(raw):
    bf16 = jnp.bfloat16
    fw, fb = _fold_bn(raw["feat_proj"])
    ow, ob = _fold_bn(raw["out_proj"])
    prep = {
        "bidirectional": raw["bidirectional"],
        "feat_w": fw.astype(bf16), "feat_b": fb,
        "out_b": ob,
        "layers_fwd": [prepare_mamba_layer(p) for p in raw["layers_fwd"]],
        "layers_bwd": [prepare_mamba_layer(p) for p in raw["layers_bwd"]],
    }
    if raw["bidirectional"]:
        cin = ow.shape[0] // 2
        prep["out_w_f"] = ow[:cin].astype(bf16)
        prep["out_w_b"] = ow[cin:].astype(bf16)
    else:
        prep["out_w"] = ow.astype(bf16)
    return prep


# ---------------------------------------------------------------------------------------------
# Pure-JAX reference with the same (intended) semantics, in f32 and without the param fusion.
# ---------------------------------------------------------------------------------------------
def _layer_norm_ref(x, g, b, eps=1e-5):
    mu = jnp.mean(x, axis=-1, keepdims=True)
    var = jnp.mean(jnp.square(x - mu), axis=-1, keepdims=True)
    return (x - mu) * lax.rsqrt(var + eps) * g + b


def mamba_block_ref(x, p):
    B, L, d_model = x.shape
    d_inner, d_state = p["A_log"].shape
    K = p["w_conv_t"].shape[0]
    dt_rank = p["w_dt_t"].shape[0]

    xn = _layer_norm_ref(x, p["ln_g"], p["ln_b"])
    xr = xn @ p["w_in_t"]
    xc, res = xr[..., :d_inner], xr[..., d_inner:]

    xp = jnp.pad(xc, ((0, 0), (K - 1, 0), (0, 0)))
    conv = p["b_conv"]
    for k in range(K):
        conv = conv + xp[:, k:k + L, :] * p["w_conv_t"][k]
    u = conv * jax.nn.sigmoid(conv)

    dbc = u @ p["w_x_t"]
    dlt_raw = dbc[..., :dt_rank]
    b_mat = dbc[..., dt_rank:dt_rank + d_state]
    c_mat = dbc[..., dt_rank + d_state:]
    dlt = jax.nn.softplus(dlt_raw @ p["w_dt_t"] + p["b_dt"])
    a_mat = -jnp.exp(p["A_log"])

    da = jnp.exp(dlt[..., None] * a_mat)
    dbu = (dlt * u)[..., None] * b_mat[:, :, None, :]

    def step(h, inp):
        da_l, dbu_l, c_l = inp
        h = da_l * h + dbu_l
        y = jnp.sum(h * c_l[:, None, :], axis=-1)
        return h, y

    h0 = jnp.zeros((B, d_inner, d_state), jnp.float32)
    _, ys = lax.scan(step, h0, (jnp.swapaxes(da, 0, 1), jnp.swapaxes(dbu, 0, 1),
                                jnp.swapaxes(c_mat, 0, 1)))
    y = jnp.swapaxes(ys, 0, 1) + u * p["D"]
    y = y * (res * jax.nn.sigmoid(res))
    return y @ p["w_out_t"] + x


def _conv_bn_ref(x_seq, p, relu, eps=1e-5):
    y = x_seq @ p["w_t"] + p["b"]
    y = (y - p["bn_mean"]) / jnp.sqrt(p["bn_var"] + eps) * p["bn_g"] + p["bn_b"]
    return jnp.maximum(y, 0.0) if relu else y


def spatial_mamba_ref(x, raw):
    B, C, H, W = x.shape
    L = H * W
    x_seq = jnp.transpose(x, (0, 2, 3, 1)).reshape(B, L, C)
    feat = _conv_bn_ref(x_seq, raw["feat_proj"], relu=True)

    x_fwd = feat
    for lp in raw["layers_fwd"]:
        x_fwd = mamba_block_ref(x_fwd, lp)

    if raw["bidirectional"]:
        x_bwd = jnp.flip(feat, axis=1)
        for lp in raw["layers_bwd"]:
            x_bwd = mamba_block_ref(x_bwd, lp)
        x_bwd = jnp.flip(x_bwd, axis=1)
        combined = jnp.concatenate([x_fwd, x_bwd], axis=-1)
    else:
        combined = x_fwd

    out = _conv_bn_ref(combined, raw["out_proj"], relu=False) + feat
    return jnp.transpose(out.reshape(B, H, W, C), (0, 3, 1, 2))


if __name__ == "__main__":
    key = jax.random.PRNGKey(0)
    k_param, k_x = jax.random.split(key)

    # Small SpatialMamba: in_channels=8, 16x16 feature map -> L=256; d_state=16, d_conv=4,
    # expand=2 -> d_inner=16, dt_rank=1; 2 layers per direction, bidirectional.
    B, C, H, W = 2, 8, 16, 16
    raw_params = init_spatial_mamba(k_param, C, d_state=16, d_conv=4, expand=2,
                                    n_layers=2, bidirectional=True)
    prep_params = prepare_spatial_mamba(raw_params)

    x = jax.random.normal(k_x, (B, C, H, W), jnp.float32)

    out = spatial_mamba(x, prep_params, chunk=128)
    jax.block_until_ready(out)
    assert out.shape == (B, C, H, W), out.shape

    ref = spatial_mamba_ref(x, raw_params)
    max_err = float(jnp.max(jnp.abs(out - ref)))
    assert max_err < 5e-2, f"mismatch vs reference: max |err| = {max_err}"

    print("KERNEL_OK")
</pallas_src>

<mosaic_0001>
module attributes {stable_mosaic.version = 11 : i64} {
  func.func @_pointwise_kernel(%arg0: i32, %arg1: i32, %arg2: memref<1x256x8xf32, #tpu.memory_space<vmem>>, %arg3: memref<8x8xbf16, #tpu.memory_space<vmem>>, %arg4: memref<1x8xf32, #tpu.memory_space<vmem>>, %arg5: memref<1x256x8xf32, #tpu.memory_space<vmem>>) attributes {dimension_semantics = [#tpu.dimension_semantics<parallel>, #tpu.dimension_semantics<parallel>], iteration_bounds = array<i64: 2, 1>, scalar_prefetch = 0 : i64, scratch_operands = 0 : i64, tpu.core_type = #tpu.core_type<tc>, window_params = [{transform_indices = @transform_0, window_bounds = array<i64: 1, 256, 8>}, {pipeline_mode = #tpu.pipeline_mode<synchronous>, transform_indices = @transform_1, window_bounds = array<i64: 8, 8>}, {pipeline_mode = #tpu.pipeline_mode<synchronous>, transform_indices = @transform_2, window_bounds = array<i64: 1, 8>}, {transform_indices = @transform_3, window_bounds = array<i64: 1, 256, 8>}]} {
    %c0 = arith.constant 0 : index
    %c0_0 = arith.constant 0 : index
    %c0_1 = arith.constant 0 : index
    %0 = vector.load %arg2[%c0, %c0_0, %c0_1] : memref<1x256x8xf32, #tpu.memory_space<vmem>>, vector<1x256x8xf32>
    %1 = vector.shape_cast %0 : vector<1x256x8xf32> to vector<256x8xf32>
    %2 = arith.truncf %1 : vector<256x8xf32> to vector<256x8xbf16>
    %c0_2 = arith.constant 0 : index
    %c0_3 = arith.constant 0 : index
    %3 = vector.load %arg3[%c0_2, %c0_3] : memref<8x8xbf16, #tpu.memory_space<vmem>>, vector<8x8xbf16>
    %cst = arith.constant dense<0.000000e+00> : vector<256x8xf32>
    %4 = tpu.matmul %2, %3, %cst {dimension_numbers = #tpu.dot_dimension_numbers<[1], [0], [0], [1], [0, 0, 1, 1], [], []>} : vector<256x8xbf16>, vector<8x8xbf16>, vector<256x8xf32> -> vector<256x8xf32>
    %c0_4 = arith.constant 0 : index
    %c0_5 = arith.constant 0 : index
    %5 = vector.load %arg4[%c0_4, %c0_5] : memref<1x8xf32, #tpu.memory_space<vmem>>, vector<1x8xf32>
    %6 = vector.broadcast %5 : vector<1x8xf32> to vector<256x8xf32>
    %7 = arith.addf %4, %6 : vector<256x8xf32>
    %cst_6 = arith.constant 0.000000e+00 : f32
    %8 = vector.broadcast %cst_6 : f32 to vector<256x8xf32>
    %9 = arith.maximumf %7, %8 : vector<256x8xf32>
    %c0_7 = arith.constant 0 : index
    %c0_8 = arith.constant 0 : index
    %c0_9 = arith.constant 0 : index
    %10 = vector.load %arg5[%c0_7, %c0_8, %c0_9] : memref<1x256x8xf32, #tpu.memory_space<vmem>>, vector<1x256x8xf32>
    %11 = vector.shape_cast %10 : vector<1x256x8xf32> to vector<256x8xf32>
    %12 = vector.shape_cast %9 : vector<256x8xf32> to vector<1x256x8xf32>
    tpu.vector_store %arg5[%c0_7, %c0_8, %c0_9], %12 {strides = array<i32>} : memref<1x256x8xf32, #tpu.memory_space<vmem>>, vector<1x256x8xf32>,
    return
  }
  func.func @transform_0(%arg0: i32, %arg1: i32) -> (i32, i32, i32) {
    %c0_i32 = arith.constant 0 : i32
    %c0_i32_0 = arith.constant 0 : i32
    return %arg0, %arg1, %c0_i32 : i32, i32, i32
  }
  func.func @transform_1(%arg0: i32, %arg1: i32) -> (i32, i32) {
    %c0_i32 = arith.constant 0 : i32
    %c0_i32_0 = arith.constant 0 : i32
    %c0_i32_1 = arith.constant 0 : i32
    return %c0_i32, %c0_i32_0 : i32, i32
  }
  func.func @transform_2(%arg0: i32, %arg1: i32) -> (i32, i32) {
    %c0_i32 = arith.constant 0 : i32
    %c0_i32_0 = arith.constant 0 : i32
    %c0_i32_1 = arith.constant 0 : i32
    return %c0_i32, %c0_i32_0 : i32, i32
  }
  func.func @transform_3(%arg0: i32, %arg1: i32) -> (i32, i32, i32) {
    %c0_i32 = arith.constant 0 : i32
    %c0_i32_0 = arith.constant 0 : i32
    return %arg0, %arg1, %c0_i32 : i32, i32, i32
  }
}

</mosaic_0001>

<llo_original>
// kernel: tpu_custom_call.1
$region0: #{tpu_custom_call.1}
  #allocation0 [shape = 'u32[]', space=smem, size = 0x4, offset = 0x4, fixed_abs, tag = 'smem constant byte address 0x4 - core index']
  #allocation1 [shape = 'u32[72,128]{1,0:T(1,128)}', space=vmem, size = 0x9000, scoped, tag = 'internal scratch']
  %s0 = inlined_call_operand.vmem [shape: f32[2,256,8], index: 0, kind: input, shape index: {}]
  %s1 = inlined_call_operand.vmem [shape: bf16[8,8], index: 1, kind: input, shape index: {}]
  %s2 = inlined_call_operand.vmem [shape: f32[1,8], index: 2, kind: input, shape index: {}]
  %s3 = inlined_call_operand.vmem [shape: f32[2,256,8], index: 3, kind: output, shape index: {}]
  %s4 = sld [smem:[#allocation0]]
  $region45: #{tpu_custom_call.1} parent=0
    _
  %s6 = ssub.s32 1, %s4
  %s7 = scalar_select 0, %s6, %s4
  loop: start=0, step=1, limit=4
  $region2: #{tpu_custom_call.1} parent=0 // loop_pre_header
    _
  $region3: #{tpu_custom_call.1} parent=0 // loop_header
    %s9 = sphi 0, %s13
    %p10 = scmp.ge.s32.totalorder %s9, 4
    %s16 = sphi 0, %s28
    %s17 = sphi 0, %s24
    %s18 = sphi 0, %s16
    %s19 = sphi 0, %s17
    %s20 = sphi 0, %s18
    %s21 = sphi 0, %s19
    %s33 = sphi 0, %s35
    %s36 = sphi 0, %s33
    %s37 = sphi 0, %s36
    %s53 = sphi 0, %s37
    %s57 = sphi 0, %s57
    %s59 = sphi 0, %s57
    %s60 = sphi 0, %s59
    %s74 = sphi 0, %s60
    %s78 = sphi 0, %s78
    %s80 = sphi 0, %s78
    %s81 = sphi 0, %s80
    %s95 = sphi 0, %s81
    %s103 = sphi 0, %s105
    %s106 = sphi 0, %s103
    %s107 = sphi 0, %s106
    %s123 = sphi 0, %s107
  $region4: #{tpu_custom_call.1} parent=0 // loop_header_branch
    %12 = sbr.rel (%p10) target = $region8
  $region5: #{tpu_custom_call.1} parent=0 // loop_body
    %s14 = ssub.s32 %s9, 1
    %s15 = ssub.s32 %s9, 2
    %s22 = sadd.s32 1, %s17
    %p23 = scmp.ge.s32.totalorder %s22, 1
    %s24 = scalar_select %p23, 0, %s22
    %s25 = sadd.s32 1, %s16
    %s26 = scalar_select %p23, %s25, %s16
    %p27 = scmp.ge.s32.totalorder %s26, 2
    %s28 = scalar_select %p27, 0, %s26
    %s29 = ssub.s32 %s16, %s28
    %s30 = ssub.s32 %s17, %s24
    %s31 = sor.u32 %s29, %s30
    %p32 = scmp.eq.s32.totalorder %s31, 0
    %s34 = sadd.s32 %s33, 1
    %s35 = scalar_select %p32, %s33, %s34
    %p38 = pneg %p32
    %p39 = scmp.eq.s32.totalorder %s9, 1
    %p40 = por %p38, %p39
    %p41 = scmp.ne.s32.totalorder %s33, %s36
    %p42 = scmp.eq.s32.totalorder %s9, 0
    %p43 = por %p41, %p42
    %p44 = scmp.ne.s32.totalorder %s33, %s36
    %p45 = scmp.eq.s32.totalorder %s14, 1
    %p46 = por %p44, %p45
    %p47 = scmp.ne.s32.totalorder %s36, %s37
    %p48 = scmp.eq.s32.totalorder %s14, 0
    %p49 = por %p47, %p48
    %p50 = scmp.ne.s32.totalorder %s36, %s37
    %p51 = scmp.eq.s32.totalorder %s15, 1
    %p52 = por %p50, %p51
    %p54 = scmp.ne.s32.totalorder %s37, %s53
    %p55 = scmp.eq.s32.totalorder %s15, 0
    %p56 = por %p54, %p55
    %s58 = sadd.s32 %s57, 1
    %p61 = scmp.eq.s32.totalorder %s9, 1
    %p62 = scmp.ne.s32.totalorder %s57, %s59
    %p63 = scmp.eq.s32.totalorder %s9, 0
    %p64 = por %p62, %p63
    %p65 = scmp.ne.s32.totalorder %s57, %s59
    %p66 = scmp.eq.s32.totalorder %s14, 1
    %p67 = por %p65, %p66
    %p68 = scmp.ne.s32.totalorder %s59, %s60
    %p69 = scmp.eq.s32.totalorder %s14, 0
    %p70 = por %p68, %p69
    %p71 = scmp.ne.s32.totalorder %s59, %s60
    %p72 = scmp.eq.s32.totalorder %s15, 1
    %p73 = por %p71, %p72
    %p75 = scmp.ne.s32.totalorder %s60, %s74
    %p76 = scmp.eq.s32.totalorder %s15, 0
    %p77 = por %p75, %p76
    %s79 = sadd.s32 %s78, 1
    %p82 = scmp.eq.s32.totalorder %s9, 1
    %p83 = scmp.ne.s32.totalorder %s78, %s80
    %p84 = scmp.eq.s32.totalorder %s9, 0
    %p85 = por %p83, %p84
    %p86 = scmp.ne.s32.totalorder %s78, %s80
    %p87 = scmp.eq.s32.totalorder %s14, 1
    %p88 = por %p86, %p87
    %p89 = scmp.ne.s32.totalorder %s80, %s81
    %p90 = scmp.eq.s32.totalorder %s14, 0
    %p91 = por %p89, %p90
    %p92 = scmp.ne.s32.totalorder %s80, %s81
    %p93 = scmp.eq.s32.totalorder %s15, 1
    %p94 = por %p92, %p93
    %p96 = scmp.ne.s32.totalorder %s81, %s95
    %p97 = scmp.eq.s32.totalorder %s15, 0
    %p98 = por %p96, %p97
    %s99 = ssub.s32 %s16, %s28
    %s100 = ssub.s32 %s17, %s24
    %s101 = sor.u32 %s99, %s100
    %p102 = scmp.eq.s32.totalorder %s101, 0
    %s104 = sadd.s32 %s103, 1
    %s105 = scalar_select %p102, %s103, %s104
    %p108 = pneg %p102
    %p109 = scmp.eq.s32.totalorder %s9, 1
    %p110 = por %p108, %p109
    %p111 = scmp.ne.s32.totalorder %s103, %s106
    %p112 = scmp.eq.s32.totalorder %s9, 0
    %p113 = por %p111, %p112
    %p114 = scmp.ne.s32.totalorder %s103, %s106
    %p115 = scmp.eq.s32.totalorder %s14, 1
    %p116 = por %p114, %p115
    %p117 = scmp.ne.s32.totalorder %s106, %s107
    %p118 = scmp.eq.s32.totalorder %s14, 0
    %p119 = por %p117, %p118
    %p120 = scmp.ne.s32.totalorder %s106, %s107
    %p121 = scmp.eq.s32.totalorder %s15, 1
    %p122 = por %p120, %p121
    %p124 = scmp.ne.s32.totalorder %s107, %s123
    %p125 = scmp.eq.s32.totalorder %s15, 0
    %p126 = por %p124, %p125
    %p127 = scmp.le.s32.totalorder 1, %s9
    %p128 = scmp.lt.s32.totalorder %s9, 3
    %p129 = pnand %p127, %p128
    %p130 = pneg %p129
    // Predicated region
    $region9: #{tpu_custom_call.1} parent=5 // pred_check
      _
    $region10: #{tpu_custom_call.1} parent=5 // pred_check_branch
      %132 = sbr.rel (%p129) target = $region12
    $region11: #{tpu_custom_call.1} parent=5 // pred_region
      %s133 = ssub.s32 %s9, 1
      // Predicated region
      $region13: #{tpu_custom_call.1} parent=11 // pred_check
        %p134 = pneg %p70
      $region14: #{tpu_custom_call.1} parent=11 // pred_check_branch
        %136 = sbr.rel (%p134) target = $region16
      $region15: #{tpu_custom_call.1} parent=11 // pred_region
        _
      $region16: #{tpu_custom_call.1} parent=11 // pred_fallthru
        _
      // Predicated region
      $region17: #{tpu_custom_call.1} parent=11 // pred_check
        %p137 = pneg %p91
      $region18: #{tpu_custom_call.1} parent=11 // pred_check_branch
        %139 = sbr.rel (%p137) target = $region20
      $region19: #{tpu_custom_call.1} parent=11 // pred_region
        _
      $region20: #{tpu_custom_call.1} parent=11 // pred_fallthru
        _
    $region12: #{tpu_custom_call.1} parent=5 // pred_fallthru
      _
    %p140 = scmp.lt.s32.totalorder %s9, 2
    // Predicated region
    $region21: #{tpu_custom_call.1} parent=5 // pred_check
      %p141 = pneg %p140
    $region22: #{tpu_custom_call.1} parent=5 // pred_check_branch
      %143 = sbr.rel (%p141) target = $region24
    $region23: #{tpu_custom_call.1} parent=5 // pred_region
      // Predicated region
      $region25: #{tpu_custom_call.1} parent=23 // pred_check
        %p144 = pneg %p43
      $region26: #{tpu_custom_call.1} parent=23 // pred_check_branch
        %146 = sbr.rel (%p144) target = $region28
      $region27: #{tpu_custom_call.1} parent=23 // pred_region
        %s147 = smul.u32 32, %s17
        %p148 = scmp.lt.s32.totalorder %s16, 1
        %s149 = scalar_select %p148, %s16, 1
        %p150 = scmp.lt.s32.totalorder %s147, 31
        %s151 = scalar_select %p150, %s147, 31
        %s152 = smul.addr %s149, 32
        %s153 = sadd.s32 %s151, %s152
        %s154 = smul.addr %s153, 8
        %s155 = scalar_lea.vmem %s0, %s154
        %s156 = smul.u32 32, %s17
      $region28: #{tpu_custom_call.1} parent=23 // pred_fallthru
        _
    $region24: #{tpu_custom_call.1} parent=5 // pred_fallthru
      _
    %p157 = scmp.le.s32.totalorder 1, %s9
    %p158 = scmp.lt.s32.totalorder %s9, 3
    %p159 = pnand %p157, %p158
    %p160 = pneg %p159
    // Predicated region
    $region29: #{tpu_custom_call.1} parent=5 // pred_check
      _
    $region30: #{tpu_custom_call.1} parent=5 // pred_check_branch
      %162 = sbr.rel (%p159) target = $region32
    $region31: #{tpu_custom_call.1} parent=5 // pred_region
      %s163 = ssub.s32 %s9, 1
      %s164 = smul.u32 32, %s19
      %p165 = scmp.lt.s32.totalorder %s18, 1
      %s166 = scalar_select %p165, %s18, 1
      %p167 = scmp.lt.s32.totalorder %s164, 31
      %s168 = scalar_select %p167, %s164, 31
      %s169 = smul.addr %s166, 32
      %s170 = sadd.s32 %s168, %s169
      %s171 = smul.addr %s170, 8
      %s172 = scalar_lea.vmem %s0, %s171
      %p173 = pneg %p49
      %p174 = pneg %p46
      %p175 = pneg %p70
      %p176 = pneg %p67
      %p177 = pneg %p91
      %p178 = pneg %p88
      %p179 = pneg %p119
      %p180 = pneg %p116
      %s181 = smul.u32 32, %s19
      %p182 = scmp.lt.s32.totalorder %s18, 1
      %s183 = scalar_select %p182, %s18, 1
      %p184 = scmp.lt.s32.totalorder %s181, 31
      %s185 = scalar_select %p184, %s181, 31
      %s186 = smul.addr %s183, 32
      %s187 = sadd.s32 %s185, %s186
      %s188 = smul.addr %s187, 8
      %s189 = scalar_lea.vmem %s3, %s188
      %s190 = smul.u32 32, %s19
      %p191 = scmp.lt.s32.totalorder %s18, 1
      %s192 = scalar_select %p191, %s18, 1
      %p193 = scmp.lt.s32.totalorder %s190, 31
      %s194 = scalar_select %p193, %s190, 31
      %s195 = smul.addr %s192, 32
      %s196 = sadd.s32 %s194, %s195
      %s197 = smul.addr %s196, 8
      %s198 = scalar_lea.vmem %s0, %s197
      %s199 = smul.u32 32, %s19
      %s200 = smul.u32 32, %s19
      %p201 = scmp.lt.s32.totalorder %s18, 1
      %s202 = scalar_select %p201, %s18, 1
      %p203 = scmp.lt.s32.totalorder %s200, 31
      %s204 = scalar_select %p203, %s200, 31
      %s205 = smul.addr %s202, 32
      %s206 = sadd.s32 %s204, %s205
      %s207 = smul.addr %s206, 8
      %s208 = scalar_lea.vmem %s3, %s207
      %s209 = smul.u32 32, %s19
      %v211 = vld [vmem:[%s198] sm:$0xff]
      %v212 = vld [vmem:[%s198 + $0x8] sm:$0xff]
      %v213 = vld [vmem:[%s198 + $0x10] sm:$0xff]
      %v214 = vld [vmem:[%s198 + $0x18] sm:$0xff]
      %v215 = vld [vmem:[%s198 + $0x20] sm:$0xff]
      %v216 = vld [vmem:[%s198 + $0x28] sm:$0xff]
      %v217 = vld [vmem:[%s198 + $0x30] sm:$0xff]
      %v218 = vld [vmem:[%s198 + $0x38] sm:$0xff]
      %v219 = vld [vmem:[%s198 + $0x40] sm:$0xff]
      %v220 = vld [vmem:[%s198 + $0x48] sm:$0xff]
      %v221 = vld [vmem:[%s198 + $0x50] sm:$0xff]
      %v222 = vld [vmem:[%s198 + $0x58] sm:$0xff]
      %v223 = vld [vmem:[%s198 + $0x60] sm:$0xff]
      %v224 = vld [vmem:[%s198 + $0x68] sm:$0xff]
      %v225 = vld [vmem:[%s198 + $0x70] sm:$0xff]
      %v226 = vld [vmem:[%s198 + $0x78] sm:$0xff]
      %v227 = vld [vmem:[%s198 + $0x80] sm:$0xff]
      %v228 = vld [vmem:[%s198 + $0x88] sm:$0xff]
      %v229 = vld [vmem:[%s198 + $0x90] sm:$0xff]
      %v230 = vld [vmem:[%s198 + $0x98] sm:$0xff]
      %v231 = vld [vmem:[%s198 + $0xa0] sm:$0xff]
      %v232 = vld [vmem:[%s198 + $0xa8] sm:$0xff]
      %v233 = vld [vmem:[%s198 + $0xb0] sm:$0xff]
      %v234 = vld [vmem:[%s198 + $0xb8] sm:$0xff]
      %v235 = vld [vmem:[%s198 + $0xc0] sm:$0xff]
      %v236 = vld [vmem:[%s198 + $0xc8] sm:$0xff]
      %v237 = vld [vmem:[%s198 + $0xd0] sm:$0xff]
      %v238 = vld [vmem:[%s198 + $0xd8] sm:$0xff]
      %v239 = vld [vmem:[%s198 + $0xe0] sm:$0xff]
      %v240 = vld [vmem:[%s198 + $0xe8] sm:$0xff]
      %v241 = vld [vmem:[%s198 + $0xf0] sm:$0xff]
      %v242 = vld [vmem:[%s198 + $0xf8] sm:$0xff]
      %v243 = vpack.c.bf16 %v212, %v211
      %v244 = vpack.c.bf16 %v214, %v213
      %v245 = vpack.c.bf16 %v216, %v215
      %v246 = vpack.c.bf16 %v218, %v217
      %v247 = vpack.c.bf16 %v220, %v219
      %v248 = vpack.c.bf16 %v222, %v221
      %v249 = vpack.c.bf16 %v224, %v223
      %v250 = vpack.c.bf16 %v226, %v225
      %v251 = vpack.c.bf16 %v228, %v227
      %v252 = vpack.c.bf16 %v230, %v229
      %v253 = vpack.c.bf16 %v232, %v231
      %v254 = vpack.c.bf16 %v234, %v233
      %v255 = vpack.c.bf16 %v236, %v235
      %v256 = vpack.c.bf16 %v238, %v237
      %v257 = vpack.c.bf16 %v240, %v239
      %v258 = vpack.c.bf16 %v242, %v241
      %v259 = vld [vmem:[%s1] sm:$0xf]
      %v260 = vld [vmem:[%s2] sm:$0x1]
      %v262 = vperm.slane %v260, 0
      %vm264 = vcmask 64512
      %v266 = vsel %vm264, %v243, 0
      %v269 = vsel %vm264, %v244, 0
      %v272 = vsel %vm264, %v245, 0
      %v275 = vsel %vm264, %v246, 0
      %v278 = vsel %vm264, %v247, 0
      %v281 = vsel %vm264, %v248, 0
      %v284 = vsel %vm264, %v249, 0
      %v287 = vsel %vm264, %v250, 0
      %v290 = vsel %vm264, %v251, 0
      %v293 = vsel %vm264, %v252, 0
      %v296 = vsel %vm264, %v253, 0
      %v299 = vsel %vm264, %v254, 0
      %v302 = vsel %vm264, %v255, 0
      %v305 = vsel %vm264, %v256, 0
      %v308 = vsel %vm264, %v257, 0
      %v311 = vsel %vm264, %v258, 0
      %vm313 = vcmask 1043456
      %v315 = vsel %vm313, %v259, 0
      %317 = vmatpush.bf16.msra.mxu0 0
      %318 = vmatpush.bf16.msra.mxu0 0
      %319 = vmatpush.bf16.msra.mxu0 0
      %320 = vmatpush.bf16.msra.mxu0 0
      %321 = vmatpush.bf16.msra.mxu0 0
      %322 = vmatpush.bf16.msra.mxu0 0
      %323 = vmatpush.bf16.msra.mxu0 0
      %324 = vmatpush.bf16.msra.mxu0 %v315
      %325 = vmatmul.bf16.gmra.mxu0 %v266
      %v326 = vpop.f32.mrf.mxu0
      %v327 = vadd.f32 %v262, %v326
      %v328 = vpop.f32.mrf.mxu0
      %v329 = vadd.f32 %v262, %v328
      %330 = vmatmul.bf16.gmra.mxu0 %v269
      %v331 = vpop.f32.mrf.mxu0
      %v332 = vadd.f32 %v262, %v331
      %v333 = vpop.f32.mrf.mxu0
      %v334 = vadd.f32 %v262, %v333
      %335 = vmatmul.bf16.gmra.mxu0 %v272
      %v336 = vpop.f32.mrf.mxu0
      %v337 = vadd.f32 %v262, %v336
      %v338 = vpop.f32.mrf.mxu0
      %v339 = vadd.f32 %v262, %v338
      %340 = vmatmul.bf16.gmra.mxu0 %v275
      %v341 = vpop.f32.mrf.mxu0
      %v342 = vadd.f32 %v262, %v341
      %v343 = vpop.f32.mrf.mxu0
      %v344 = vadd.f32 %v262, %v343
      %345 = vmatmul.bf16.gmra.mxu0 %v278
      %v346 = vpop.f32.mrf.mxu0
      %v347 = vadd.f32 %v262, %v346
      %v348 = vpop.f32.mrf.mxu0
      %v349 = vadd.f32 %v262, %v348
      %350 = vmatmul.bf16.gmra.mxu0 %v281
      %v351 = vpop.f32.mrf.mxu0
      %v352 = vadd.f32 %v262, %v351
      %v353 = vpop.f32.mrf.mxu0
      %v354 = vadd.f32 %v262, %v353
      %355 = vmatmul.bf16.gmra.mxu0 %v284
      %v356 = vpop.f32.mrf.mxu0
      %v357 = vadd.f32 %v262, %v356
      %v358 = vpop.f32.mrf.mxu0
      %v359 = vadd.f32 %v262, %v358
      %360 = vmatmul.bf16.gmra.mxu0 %v287
      %v361 = vpop.f32.mrf.mxu0
      %v362 = vadd.f32 %v262, %v361
      %v363 = vpop.f32.mrf.mxu0
      %v364 = vadd.f32 %v262, %v363
      %365 = vmatmul.bf16.gmra.mxu0 %v290
      %v366 = vpop.f32.mrf.mxu0
      %v367 = vadd.f32 %v262, %v366
      %v368 = vpop.f32.mrf.mxu0
      %v369 = vadd.f32 %v262, %v368
      %370 = vmatmul.bf16.gmra.mxu0 %v293
      %v371 = vpop.f32.mrf.mxu0
      %v372 = vadd.f32 %v262, %v371
      %v373 = vpop.f32.mrf.mxu0
      %v374 = vadd.f32 %v262, %v373
      %375 = vmatmul.bf16.gmra.mxu0 %v296
      %v376 = vpop.f32.mrf.mxu0
      %v377 = vadd.f32 %v262, %v376
      %v378 = vpop.f32.mrf.mxu0
      %v379 = vadd.f32 %v262, %v378
      %380 = vmatmul.bf16.gmra.mxu0 %v299
      %v381 = vpop.f32.mrf.mxu0
      %v382 = vadd.f32 %v262, %v381
      %v383 = vpop.f32.mrf.mxu0
      %v384 = vadd.f32 %v262, %v383
      %385 = vmatmul.bf16.gmra.mxu0 %v302
      %v386 = vpop.f32.mrf.mxu0
      %v387 = vadd.f32 %v262, %v386
      %v388 = vpop.f32.mrf.mxu0
      %v389 = vadd.f32 %v262, %v388
      %390 = vmatmul.bf16.gmra.mxu0 %v305
      %v391 = vpop.f32.mrf.mxu0
      %v392 = vadd.f32 %v262, %v391
      %v393 = vpop.f32.mrf.mxu0
      %v394 = vadd.f32 %v262, %v393
      %395 = vmatmul.bf16.gmra.mxu0 %v308
      %v396 = vpop.f32.mrf.mxu0
      %v397 = vadd.f32 %v262, %v396
      %v398 = vpop.f32.mrf.mxu0
      %v399 = vadd.f32 %v262, %v398
      %400 = vmatmul.bf16.gmra.mxu0 %v311
      %v401 = vpop.f32.mrf.mxu0
      %v402 = vadd.f32 %v262, %v401
      %v403 = vpop.f32.mrf.mxu0
      %v404 = vadd.f32 %v262, %v403
      %405 = vdwg.mxu0
      %v406 = vmax.f32 %v327, 0.0
      %v407 = vmax.f32 %v329, 0.0
      %v408 = vmax.f32 %v332, 0.0
      %v409 = vmax.f32 %v334, 0.0
      %v410 = vmax.f32 %v337, 0.0
      %v411 = vmax.f32 %v339, 0.0
      %v412 = vmax.f32 %v342, 0.0
      %v413 = vmax.f32 %v344, 0.0
      %v414 = vmax.f32 %v347, 0.0
      %v415 = vmax.f32 %v349, 0.0
      %v416 = vmax.f32 %v352, 0.0
      %v417 = vmax.f32 %v354, 0.0
      %v418 = vmax.f32 %v357, 0.0
      %v419 = vmax.f32 %v359, 0.0
      %v420 = vmax.f32 %v362, 0.0
      %v421 = vmax.f32 %v364, 0.0
      %v422 = vmax.f32 %v367, 0.0
      %v423 = vmax.f32 %v369, 0.0
      %v424 = vmax.f32 %v372, 0.0
      %v425 = vmax.f32 %v374, 0.0
      %v426 = vmax.f32 %v377, 0.0
      %v427 = vmax.f32 %v379, 0.0
      %v428 = vmax.f32 %v382, 0.0
      %v429 = vmax.f32 %v384, 0.0
      %v430 = vmax.f32 %v387, 0.0
      %v431 = vmax.f32 %v389, 0.0
      %v432 = vmax.f32 %v392, 0.0
      %v433 = vmax.f32 %v394, 0.0
      %v434 = vmax.f32 %v397, 0.0
      %v435 = vmax.f32 %v399, 0.0
      %v436 = vmax.f32 %v402, 0.0
      %v437 = vmax.f32 %v404, 0.0
      %438 = vst.msk [vmem:[%s208] sm:$0xff] %vm264, %v406
      %439 = vst.msk [vmem:[%s208 + $0x8] sm:$0xff] %vm264, %v407
      %440 = vst.msk [vmem:[%s208 + $0x10] sm:$0xff] %vm264, %v408
      %441 = vst.msk [vmem:[%s208 + $0x18] sm:$0xff] %vm264, %v409
      %442 = vst.msk [vmem:[%s208 + $0x20] sm:$0xff] %vm264, %v410
      %443 = vst.msk [vmem:[%s208 + $0x28] sm:$0xff] %vm264, %v411
      %444 = vst.msk [vmem:[%s208 + $0x30] sm:$0xff] %vm264, %v412
      %445 = vst.msk [vmem:[%s208 + $0x38] sm:$0xff] %vm264, %v413
      %446 = vst.msk [vmem:[%s208 + $0x40] sm:$0xff] %vm264, %v414
      %447 = vst.msk [vmem:[%s208 + $0x48] sm:$0xff] %vm264, %v415
      %448 = vst.msk [vmem:[%s208 + $0x50] sm:$0xff] %vm264, %v416
      %449 = vst.msk [vmem:[%s208 + $0x58] sm:$0xff] %vm264, %v417
      %450 = vst.msk [vmem:[%s208 + $0x60] sm:$0xff] %vm264, %v418
      %451 = vst.msk [vmem:[%s208 + $0x68] sm:$0xff] %vm264, %v419
      %452 = vst.msk [vmem:[%s208 + $0x70] sm:$0xff] %vm264, %v420
      %453 = vst.msk [vmem:[%s208 + $0x78] sm:$0xff] %vm264, %v421
      %454 = vst.msk [vmem:[%s208 + $0x80] sm:$0xff] %vm264, %v422
      %455 = vst.msk [vmem:[%s208 + $0x88] sm:$0xff] %vm264, %v423
      %456 = vst.msk [vmem:[%s208 + $0x90] sm:$0xff] %vm264, %v424
      %457 = vst.msk [vmem:[%s208 + $0x98] sm:$0xff] %vm264, %v425
      %458 = vst.msk [vmem:[%s208 + $0xa0] sm:$0xff] %vm264, %v426
      %459 = vst.msk [vmem:[%s208 + $0xa8] sm:$0xff] %vm264, %v427
      %460 = vst.msk [vmem:[%s208 + $0xb0] sm:$0xff] %vm264, %v428
      %461 = vst.msk [vmem:[%s208 + $0xb8] sm:$0xff] %vm264, %v429
      %462 = vst.msk [vmem:[%s208 + $0xc0] sm:$0xff] %vm264, %v430
      %463 = vst.msk [vmem:[%s208 + $0xc8] sm:$0xff] %vm264, %v431
      %464 = vst.msk [vmem:[%s208 + $0xd0] sm:$0xff] %vm264, %v432
      %465 = vst.msk [vmem:[%s208 + $0xd8] sm:$0xff] %vm264, %v433
      %466 = vst.msk [vmem:[%s208 + $0xe0] sm:$0xff] %vm264, %v434
      %467 = vst.msk [vmem:[%s208 + $0xe8] sm:$0xff] %vm264, %v435
      %468 = vst.msk [vmem:[%s208 + $0xf0] sm:$0xff] %vm264, %v436
      %469 = vst.msk [vmem:[%s208 + $0xf8] sm:$0xff] %vm264, %v437
      %s470 = smul.u32 32, %s19
      %p471 = scmp.lt.s32.totalorder %s18, 1
      %s472 = scalar_select %p471, %s18, 1
      %p473 = scmp.lt.s32.totalorder %s470, 31
      %s474 = scalar_select %p473, %s470, 31
      %s475 = smul.addr %s472, 32
      %s476 = sadd.s32 %s474, %s475
      %s477 = smul.addr %s476, 8
      %s478 = scalar_lea.vmem %s3, %s477
      // Predicated region
      $region33: #{tpu_custom_call.1} parent=31 // pred_check
        %p479 = pneg %p116
      $region34: #{tpu_custom_call.1} parent=31 // pred_check_branch
        %481 = sbr.rel (%p479) target = $region36
      $region35: #{tpu_custom_call.1} parent=31 // pred_region
        %s482 = smul.u32 32, %s19
      $region36: #{tpu_custom_call.1} parent=31 // pred_fallthru
        _
    $region32: #{tpu_custom_call.1} parent=5 // pred_fallthru
      _
    %p483 = scmp.le.s32.totalorder 2, %s9
    // Predicated region
    $region37: #{tpu_custom_call.1} parent=5 // pred_check
      %p484 = pneg %p483
    $region38: #{tpu_custom_call.1} parent=5 // pred_check_branch
      %486 = sbr.rel (%p484) target = $region40
    $region39: #{tpu_custom_call.1} parent=5 // pred_region
      %s487 = ssub.s32 %s9, 2
      // Predicated region
      $region41: #{tpu_custom_call.1} parent=39 // pred_check
        %p488 = pneg %p122
      $region42: #{tpu_custom_call.1} parent=39 // pred_check_branch
        %490 = sbr.rel (%p488) target = $region44
      $region43: #{tpu_custom_call.1} parent=39 // pred_region
        %s491 = smul.u32 32, %s21
        %p492 = scmp.lt.s32.totalorder %s20, 1
        %s493 = scalar_select %p492, %s20, 1
        %p494 = scmp.lt.s32.totalorder %s491, 31
        %s495 = scalar_select %p494, %s491, 31
        %s496 = smul.addr %s493, 32
        %s497 = sadd.s32 %s495, %s496
        %s498 = smul.addr %s497, 8
        %s499 = scalar_lea.vmem %s3, %s498
      $region44: #{tpu_custom_call.1} parent=39 // pred_fallthru
        _
    $region40: #{tpu_custom_call.1} parent=5 // pred_fallthru
      _
  $region6: #{tpu_custom_call.1} parent=0 // loop_footer
    %s13 = sadd.s32 1, %s9
  $region7: #{tpu_custom_call.1} parent=0 // loop_footer_branch
    %8 = sbr.rel target = $region3
  $region8: #{tpu_custom_call.1} parent=0 // loop_exit
    _

</llo_original>
